<compile_context>
chip_gen: v7x
topology: tpu7x:2x2x1
jax: 0.10.0
libtpu: 0.0.40
codegen_flags: <defaults>
</compile_context>

<pallas_src>
import jax
import jax.numpy as jnp
from jax.experimental import pallas as pl
from jax.experimental.pallas import tpu as pltpu


def _round_up(x, m):
    return ((x + m - 1) // m) * m


def _vmem_capacity_bytes():
    """Per-core VMEM capacity; conservative 64 MiB (v7x) fallback."""
    try:
        info = pltpu.get_tpu_info()
        cap = getattr(info, "vmem_capacity_bytes", None)
        if cap:
            return int(cap)
    except Exception:
        pass
    return 64 * 1024 * 1024


def _choose_tiles(B, Kp, Np):
    """Pick tile sizes for an (Mp,Kp) x (Kp,Np) bf16-operand / f32-acc matmul."""
    # ---- M (batch): sublane dim, multiple of 16 for bf16 packing; avoid
    # gross over-padding by splitting B into the fewest <=512-row tiles.
    m_cap = 512
    n_m_tiles = -(-B // m_cap)                       # ceil
    tm = _round_up(-(-B // n_m_tiles), 16)
    Mp = tm * n_m_tiles

    # ---- N (classes): lane dim.  Small heads keep the full (unpadded) N
    # block; padded heads are a multiple of 256, tile at 256/512.
    if Np <= 512:
        tn = Np
    else:
        tn = 512 if Np % 512 == 0 else 256
    # Megacore (v7x): if M collapsed to one step, try to give the N axis >=2
    # parallel steps.
    if Mp // tm == 1 and Np // tn == 1 and tn >= 512 and tn % 512 == 0:
        tn //= 2

    # ---- K (features): grow tk (multiple of 128, divides Kp) until the
    # double-buffered working set hits ~60% of this generation's VMEM.
    budget = int(_vmem_capacity_bytes() * 0.6)

    def working_set(tk_):
        return (2 * tm * tk_ * 4        # x tile, f32 in HBM, double-buffered
                + 2 * tk_ * tn * 2      # W^T tile, bf16, double-buffered
                + 2 * 1 * tn * 4        # bias tile
                + tm * tn * 4)          # resident f32 output block

    tk = Kp                              # Kp is a multiple of 128
    while tk > 128 and (working_set(tk) > budget or Kp % tk != 0):
        tk -= 128

    return tm, tn, tk, Mp, working_set(tk)


def _head_matmul_kernel(x_ref, w_ref, b_ref, o_ref):
    # x_ref : (tm, tk)  f32  activation tile (cast to bf16 for the MXU)
    # w_ref : (tk, tn)  bf16 weight tile, already transposed to (K, N)
    # b_ref : (1,  tn)  f32  bias tile (N-indexed only)
    # o_ref : (tm, tn)  f32  output tile, resident across the K grid axis
    k = pl.program_id(2)

    @pl.when(k == 0)
    def _():
        # Initialize the resident output block with the bias; the K loop then
        # accumulates straight into it (no scratch, no finalize copy).
        o_ref[...] = jnp.broadcast_to(b_ref[...], o_ref.shape)

    o_ref[...] += jnp.dot(
        x_ref[...].astype(jnp.bfloat16),
        w_ref[...],
        preferred_element_type=jnp.float32,
    )


def prepare_head_params(weight, bias, param_dtype=jnp.bfloat16):
    """One-time (init-time) weight/bias preparation.

    weight: (num_classes, in_features) f32, PyTorch layout.
    bias:   (num_classes,)             f32.
    Returns (w_t, bias2d, num_classes) where
      w_t    : (Kp, Np) param_dtype, transposed + K padded to 128 multiple,
               N padded to a 256 multiple only when num_classes > 128.
      bias2d : (1, Np) f32.
    """
    N, K = weight.shape
    Kp = _round_up(K, 128)
    Np = N if N <= 128 else _round_up(N, 256)

    w_t = jnp.transpose(weight)                              # (K, N)
    if Kp != K or Np != N:
        w_t = jnp.pad(w_t, ((0, Kp - K), (0, Np - N)))
    w_t = w_t.astype(param_dtype)

    b = bias.astype(jnp.float32)
    if Np != N:
        b = jnp.pad(b, (0, Np - N))
    bias2d = b.reshape(1, Np)
    return w_t, bias2d, N


def head_forward(x, w_t, bias2d, num_classes):
    """Pallas equivalent of Head.forward (nn.Linear) on prepared params.

    x: (B, in_features) f32.  Returns (B, num_classes) f32.
    """
    B, K = x.shape
    Kp, Np = w_t.shape
    assert K <= Kp, "activation feature dim larger than prepared weight"

    tm, tn, tk, Mp, ws_bytes = _choose_tiles(B, Kp, Np)

    # Per-call padding of the (small) activation only; zeros contribute
    # nothing to the contraction.
    xp = x
    if Mp != B or Kp != K:
        xp = jnp.pad(x, ((0, Mp - B), (0, Kp - K)))

    grid = (Mp // tm, Np // tn, Kp // tk)

    cap = _vmem_capacity_bytes()
    vmem_limit = int(min(cap * 0.75, max(ws_bytes * 2, 32 * 1024 * 1024)))

    out_padded = pl.pallas_call(
        _head_matmul_kernel,
        out_shape=jax.ShapeDtypeStruct((Mp, Np), jnp.float32),
        grid_spec=pltpu.PrefetchScalarGridSpec(
            num_scalar_prefetch=0,
            grid=grid,
            in_specs=[
                pl.BlockSpec((tm, tk), lambda i, j, k: (i, k)),   # x
                pl.BlockSpec((tk, tn), lambda i, j, k: (k, j)),   # W^T (K, N)
                pl.BlockSpec((1, tn), lambda i, j, k: (0, j)),    # bias
            ],
            out_specs=pl.BlockSpec((tm, tn), lambda i, j, k: (i, j)),
        ),
        compiler_params=pltpu.CompilerParams(
            dimension_semantics=("parallel", "parallel", "arbitrary"),
            vmem_limit_bytes=vmem_limit,
        ),
    )(xp, w_t, bias2d)

    return out_padded[:B, :num_classes]


if __name__ == "__main__":
    # Small shapes consistent with the module: Head(num_classes=16) with the
    # default in_features=512.
    B = 8
    in_features = 512
    num_classes = 16

    key = jax.random.PRNGKey(0)
    kx, kw, kb = jax.random.split(key, 3)

    # Deterministic parameter init (uniform like PyTorch's default Linear init)
    bound = 1.0 / jnp.sqrt(in_features)
    weight = jax.random.uniform(
        kw, (num_classes, in_features), jnp.float32, -bound, bound)
    bias = jax.random.uniform(
        kb, (num_classes,), jnp.float32, -bound, bound)

    x = jax.random.normal(kx, (B, in_features), jnp.float32)

    # One-time parameter preparation (transpose / pad / bf16 cast), then call.
    w_t, bias2d, n_cls = prepare_head_params(weight, bias)
    y = head_forward(x, w_t, bias2d, n_cls)
    y = jax.block_until_ready(y)

    # Reference check against plain JAX (bf16 operands -> looser tolerance).
    y_ref = x @ weight.T + bias
    assert y.shape == (B, num_classes)
    err = float(jnp.max(jnp.abs(y - y_ref)))
    assert jnp.allclose(y, y_ref, atol=5e-2, rtol=5e-2), err

    print("KERNEL_OK")
</pallas_src>

<mosaic_0001>
module attributes {stable_mosaic.version = 11 : i64} {
  func.func @_head_matmul_kernel(%arg0: i32, %arg1: i32, %arg2: i32, %arg3: memref<16x512xf32, #tpu.memory_space<vmem>>, %arg4: memref<512x16xbf16, #tpu.memory_space<vmem>>, %arg5: memref<1x16xf32, #tpu.memory_space<vmem>>, %arg6: memref<16x16xf32, #tpu.memory_space<vmem>>) attributes {dimension_semantics = [#tpu.dimension_semantics<parallel>, #tpu.dimension_semantics<parallel>, #tpu.dimension_semantics<arbitrary>], iteration_bounds = array<i64: 1, 1, 1>, scalar_prefetch = 0 : i64, scratch_operands = 0 : i64, tpu.core_type = #tpu.core_type<tc>, window_params = [{transform_indices = @transform_0, window_bounds = array<i64: 16, 512>}, {transform_indices = @transform_1, window_bounds = array<i64: 512, 16>}, {transform_indices = @transform_2, window_bounds = array<i64: 1, 16>}, {transform_indices = @transform_3, window_bounds = array<i64: 16, 16>}]} {
    %c0_i32 = arith.constant 0 : i32
    %0 = arith.cmpi eq, %arg2, %c0_i32 : i32
    %1 = arith.extui %0 : i1 to i32
    %c0_i32_0 = arith.constant 0 : i32
    %2 = arith.cmpi ne, %1, %c0_i32_0 : i32
    scf.if %2 {
      %c0_8 = arith.constant 0 : index
      %c0_9 = arith.constant 0 : index
      %10 = vector.load %arg5[%c0_8, %c0_9] : memref<1x16xf32, #tpu.memory_space<vmem>>, vector<1x16xf32>
      %11 = vector.shape_cast %10 : vector<1x16xf32> to vector<1x16xf32>
      %12 = vector.broadcast %11 : vector<1x16xf32> to vector<16x16xf32>
      %c0_10 = arith.constant 0 : index
      %c0_11 = arith.constant 0 : index
      %13 = vector.load %arg6[%c0_10, %c0_11] : memref<16x16xf32, #tpu.memory_space<vmem>>, vector<16x16xf32>
      tpu.vector_store %arg6[%c0_10, %c0_11], %12 {strides = array<i32>} : memref<16x16xf32, #tpu.memory_space<vmem>>, vector<16x16xf32>,
    } else {
    }
    %c0 = arith.constant 0 : index
    %c0_1 = arith.constant 0 : index
    %3 = vector.load %arg6[%c0, %c0_1] : memref<16x16xf32, #tpu.memory_space<vmem>>, vector<16x16xf32>
    %c0_2 = arith.constant 0 : index
    %c0_3 = arith.constant 0 : index
    %4 = vector.load %arg3[%c0_2, %c0_3] : memref<16x512xf32, #tpu.memory_space<vmem>>, vector<16x512xf32>
    %5 = arith.truncf %4 : vector<16x512xf32> to vector<16x512xbf16>
    %c0_4 = arith.constant 0 : index
    %c0_5 = arith.constant 0 : index
    %6 = vector.load %arg4[%c0_4, %c0_5] : memref<512x16xbf16, #tpu.memory_space<vmem>>, vector<512x16xbf16>
    %cst = arith.constant dense<0.000000e+00> : vector<16x16xf32>
    %7 = tpu.matmul %5, %6, %cst {dimension_numbers = #tpu.dot_dimension_numbers<[1], [0], [0], [1], [0, 0, 1, 1], [], []>} : vector<16x512xbf16>, vector<512x16xbf16>, vector<16x16xf32> -> vector<16x16xf32>
    %8 = arith.addf %3, %7 : vector<16x16xf32>
    %c0_6 = arith.constant 0 : index
    %c0_7 = arith.constant 0 : index
    %9 = vector.load %arg6[%c0_6, %c0_7] : memref<16x16xf32, #tpu.memory_space<vmem>>, vector<16x16xf32>
    tpu.vector_store %arg6[%c0_6, %c0_7], %8 {strides = array<i32>} : memref<16x16xf32, #tpu.memory_space<vmem>>, vector<16x16xf32>,
    return
  }
  func.func @transform_0(%arg0: i32, %arg1: i32, %arg2: i32) -> (i32, i32) {
    %c0_i32 = arith.constant 0 : i32
    return %arg0, %arg2 : i32, i32
  }
  func.func @transform_1(%arg0: i32, %arg1: i32, %arg2: i32) -> (i32, i32) {
    %c0_i32 = arith.constant 0 : i32
    return %arg2, %arg1 : i32, i32
  }
  func.func @transform_2(%arg0: i32, %arg1: i32, %arg2: i32) -> (i32, i32) {
    %c0_i32 = arith.constant 0 : i32
    %c0_i32_0 = arith.constant 0 : i32
    return %c0_i32, %arg1 : i32, i32
  }
  func.func @transform_3(%arg0: i32, %arg1: i32, %arg2: i32) -> (i32, i32) {
    %c0_i32 = arith.constant 0 : i32
    return %arg0, %arg1 : i32, i32
  }
}

</mosaic_0001>

<llo_original>
// kernel: tpu_custom_call.1
$region0: #{tpu_custom_call.1}
  #allocation0 [shape = 'u32[]', space=smem, size = 0x4, offset = 0x4, fixed_abs, tag = 'smem constant byte address 0x4 - core index']
  #allocation1 [shape = 'u32[144,128]{1,0:T(1,128)}', space=vmem, size = 0x12000, scoped, tag = 'internal scratch']
  %s0 = inlined_call_operand.vmem [shape: f32[16,512], index: 0, kind: input, shape index: {}]
  %s1 = inlined_call_operand.vmem [shape: bf16[512,16], index: 1, kind: input, shape index: {}]
  %s2 = inlined_call_operand.vmem [shape: f32[1,16], index: 2, kind: input, shape index: {}]
  %s3 = inlined_call_operand.hbm [shape: f32[16,16], index: 3, kind: output, shape index: {}]
  %s4 = sld [smem:[#allocation0]]
  $region26: #{tpu_custom_call.1} parent=0
    _
  %s6 = ssub.s32 1, %s4
  %s7 = scalar_select 0, %s6, %s4
  $region1: #{tpu_custom_call.1} parent=0
    #allocation2 [shape = 'u8[8192]{0}', space=vmem, size = 0x2000, scoped, tag = 'output window, operand 0, single buffered']
    #allocation3 [shape = 's32[1]{0}', space=sflag, size = 0x4, scoped, tag = 'scoped memory for tpu_custom_call.1']
    %8 = vsyncpa [#allocation3], 0
    // Predicated region
    $region2: #{tpu_custom_call.1} parent=1 // pred_check
      _
    $region3: #{tpu_custom_call.1} parent=1 // pred_check_branch
      %10 = sbr.rel (0) target = $region5
    $region4: #{tpu_custom_call.1} parent=1 // pred_region
      _
    $region5: #{tpu_custom_call.1} parent=1 // pred_fallthru
      _
    // Predicated region
    $region6: #{tpu_custom_call.1} parent=1 // pred_check
      _
    $region7: #{tpu_custom_call.1} parent=1 // pred_check_branch
      %12 = sbr.rel (0) target = $region9
    $region8: #{tpu_custom_call.1} parent=1 // pred_region
      _
    $region9: #{tpu_custom_call.1} parent=1 // pred_fallthru
      _
    // Predicated region
    $region10: #{tpu_custom_call.1} parent=1 // pred_check
      _
    $region11: #{tpu_custom_call.1} parent=1 // pred_check_branch
      %14 = sbr.rel (0) target = $region13
    $region12: #{tpu_custom_call.1} parent=1 // pred_region
      _
    $region13: #{tpu_custom_call.1} parent=1 // pred_fallthru
      _
    %p16 = scmp.eq.s32.totalorder 0, 0
    // Predicated region
    $region14: #{tpu_custom_call.1} parent=1 // pred_check
      %p17 = pneg %p16
    $region15: #{tpu_custom_call.1} parent=1 // pred_check_branch
      %19 = sbr.rel (%p17) target = $region17
    $region16: #{tpu_custom_call.1} parent=1 // pred_region
      %v20 = vld [vmem:[%s2] sm:$0x1]
      %v22 = vlaneseq
      %v23 = vshrl.u32 %v22, 7
      %v24 = vsub.s32 0, %v23
      %v25 = vrot.slane %v20, %v24
      %vm27 = vcmask 130048
      %28 = vst.msk [vmem:[#allocation2] sm:$0xff] %vm27, %v25
      %29 = vst.msk [vmem:[#allocation2 + $0x8] sm:$0xff] %vm27, %v25
    $region17: #{tpu_custom_call.1} parent=1 // pred_fallthru
      _
    %v30 = vld [vmem:[#allocation2] sm:$0xff]
    %v31 = vld [vmem:[#allocation2 + $0x8] sm:$0xff]
    %v32 = vld [vmem:[%s0] sm:$0xff]
    %v33 = vld [vmem:[%s0 + $0x8] sm:$0xff]
    %v34 = vld [vmem:[%s0 + $0x10] sm:$0xff]
    %v35 = vld [vmem:[%s0 + $0x18] sm:$0xff]
    %v36 = vld [vmem:[%s0 + $0x20] sm:$0xff]
    %v37 = vld [vmem:[%s0 + $0x28] sm:$0xff]
    %v38 = vld [vmem:[%s0 + $0x30] sm:$0xff]
    %v39 = vld [vmem:[%s0 + $0x38] sm:$0xff]
    %v40 = vpack.c.bf16 %v36, %v32
    %v41 = vpack.c.bf16 %v37, %v33
    %v42 = vpack.c.bf16 %v38, %v34
    %v43 = vpack.c.bf16 %v39, %v35
    %v44 = vld [vmem:[%s1] sm:$0xf]
    %v45 = vld [vmem:[%s1 + $0x4] sm:$0xf]
    %v46 = vld [vmem:[%s1 + $0x8] sm:$0xf]
    %v47 = vld [vmem:[%s1 + $0xc] sm:$0xf]
    %v48 = vld [vmem:[%s1 + $0x10] sm:$0xf]
    %v49 = vld [vmem:[%s1 + $0x14] sm:$0xf]
    %v50 = vld [vmem:[%s1 + $0x18] sm:$0xf]
    %v51 = vld [vmem:[%s1 + $0x1c] sm:$0xf]
    %v52 = vld [vmem:[%s1 + $0x20] sm:$0xf]
    %v53 = vld [vmem:[%s1 + $0x24] sm:$0xf]
    %v54 = vld [vmem:[%s1 + $0x28] sm:$0xf]
    %v55 = vld [vmem:[%s1 + $0x2c] sm:$0xf]
    %v56 = vld [vmem:[%s1 + $0x30] sm:$0xf]
    %v57 = vld [vmem:[%s1 + $0x34] sm:$0xf]
    %v58 = vld [vmem:[%s1 + $0x38] sm:$0xf]
    %v59 = vld [vmem:[%s1 + $0x3c] sm:$0xf]
    %v60 = vld [vmem:[%s1 + $0x40] sm:$0xf]
    %v61 = vld [vmem:[%s1 + $0x44] sm:$0xf]
    %v62 = vld [vmem:[%s1 + $0x48] sm:$0xf]
    %v63 = vld [vmem:[%s1 + $0x4c] sm:$0xf]
    %v64 = vld [vmem:[%s1 + $0x50] sm:$0xf]
    %v65 = vld [vmem:[%s1 + $0x54] sm:$0xf]
    %v66 = vld [vmem:[%s1 + $0x58] sm:$0xf]
    %v67 = vld [vmem:[%s1 + $0x5c] sm:$0xf]
    %v68 = vld [vmem:[%s1 + $0x60] sm:$0xf]
    %v69 = vld [vmem:[%s1 + $0x64] sm:$0xf]
    %v70 = vld [vmem:[%s1 + $0x68] sm:$0xf]
    %v71 = vld [vmem:[%s1 + $0x6c] sm:$0xf]
    %v72 = vld [vmem:[%s1 + $0x70] sm:$0xf]
    %v73 = vld [vmem:[%s1 + $0x74] sm:$0xf]
    %v74 = vld [vmem:[%s1 + $0x78] sm:$0xf]
    %v75 = vld [vmem:[%s1 + $0x7c] sm:$0xf]
    %v76 = vld [vmem:[%s1 + $0x80] sm:$0xf]
    %v77 = vld [vmem:[%s1 + $0x84] sm:$0xf]
    %v78 = vld [vmem:[%s1 + $0x88] sm:$0xf]
    %v79 = vld [vmem:[%s1 + $0x8c] sm:$0xf]
    %v80 = vld [vmem:[%s1 + $0x90] sm:$0xf]
    %v81 = vld [vmem:[%s1 + $0x94] sm:$0xf]
    %v82 = vld [vmem:[%s1 + $0x98] sm:$0xf]
    %v83 = vld [vmem:[%s1 + $0x9c] sm:$0xf]
    %v84 = vld [vmem:[%s1 + $0xa0] sm:$0xf]
    %v85 = vld [vmem:[%s1 + $0xa4] sm:$0xf]
    %v86 = vld [vmem:[%s1 + $0xa8] sm:$0xf]
    %v87 = vld [vmem:[%s1 + $0xac] sm:$0xf]
    %v88 = vld [vmem:[%s1 + $0xb0] sm:$0xf]
    %v89 = vld [vmem:[%s1 + $0xb4] sm:$0xf]
    %v90 = vld [vmem:[%s1 + $0xb8] sm:$0xf]
    %v91 = vld [vmem:[%s1 + $0xbc] sm:$0xf]
    %v92 = vld [vmem:[%s1 + $0xc0] sm:$0xf]
    %v93 = vld [vmem:[%s1 + $0xc4] sm:$0xf]
    %v94 = vld [vmem:[%s1 + $0xc8] sm:$0xf]
    %v95 = vld [vmem:[%s1 + $0xcc] sm:$0xf]
    %v96 = vld [vmem:[%s1 + $0xd0] sm:$0xf]
    %v97 = vld [vmem:[%s1 + $0xd4] sm:$0xf]
    %v98 = vld [vmem:[%s1 + $0xd8] sm:$0xf]
    %v99 = vld [vmem:[%s1 + $0xdc] sm:$0xf]
    %v100 = vld [vmem:[%s1 + $0xe0] sm:$0xf]
    %v101 = vld [vmem:[%s1 + $0xe4] sm:$0xf]
    %v102 = vld [vmem:[%s1 + $0xe8] sm:$0xf]
    %v103 = vld [vmem:[%s1 + $0xec] sm:$0xf]
    %v104 = vld [vmem:[%s1 + $0xf0] sm:$0xf]
    %v105 = vld [vmem:[%s1 + $0xf4] sm:$0xf]
    %v106 = vld [vmem:[%s1 + $0xf8] sm:$0xf]
    %v107 = vld [vmem:[%s1 + $0xfc] sm:$0xf]
    %v172 = vunpack.c.l.b16 %v44
    %v173 = vunpack.c.l.b16 %v45
    %v174 = vunpack.c.l.b16 %v46
    %v175 = vunpack.c.l.b16 %v47
    %v176 = vunpack.c.l.b16 %v48
    %v177 = vunpack.c.l.b16 %v49
    %v178 = vunpack.c.l.b16 %v50
    %v179 = vunpack.c.l.b16 %v51
    %v180 = vunpack.c.l.b16 %v52
    %v181 = vunpack.c.l.b16 %v53
    %v182 = vunpack.c.l.b16 %v54
    %v183 = vunpack.c.l.b16 %v55
    %v184 = vunpack.c.l.b16 %v56
    %v185 = vunpack.c.l.b16 %v57
    %v186 = vunpack.c.l.b16 %v58
    %v187 = vunpack.c.l.b16 %v59
    %v188 = vunpack.c.l.b16 %v60
    %v189 = vunpack.c.l.b16 %v61
    %v190 = vunpack.c.l.b16 %v62
    %v191 = vunpack.c.l.b16 %v63
    %v192 = vunpack.c.l.b16 %v64
    %v193 = vunpack.c.l.b16 %v65
    %v194 = vunpack.c.l.b16 %v66
    %v195 = vunpack.c.l.b16 %v67
    %v196 = vunpack.c.l.b16 %v68
    %v197 = vunpack.c.l.b16 %v69
    %v198 = vunpack.c.l.b16 %v70
    %v199 = vunpack.c.l.b16 %v71
    %v200 = vunpack.c.l.b16 %v72
    %v201 = vunpack.c.l.b16 %v73
    %v202 = vunpack.c.l.b16 %v74
    %v203 = vunpack.c.l.b16 %v75
    %v204 = vunpack.c.l.b16 %v76
    %v205 = vunpack.c.l.b16 %v77
    %v206 = vunpack.c.l.b16 %v78
    %v207 = vunpack.c.l.b16 %v79
    %v208 = vunpack.c.l.b16 %v80
    %v209 = vunpack.c.l.b16 %v81
    %v210 = vunpack.c.l.b16 %v82
    %v211 = vunpack.c.l.b16 %v83
    %v212 = vunpack.c.l.b16 %v84
    %v213 = vunpack.c.l.b16 %v85
    %v214 = vunpack.c.l.b16 %v86
    %v215 = vunpack.c.l.b16 %v87
    %v216 = vunpack.c.l.b16 %v88
    %v217 = vunpack.c.l.b16 %v89
    %v218 = vunpack.c.l.b16 %v90
    %v219 = vunpack.c.l.b16 %v91
    %v220 = vunpack.c.l.b16 %v92
    %v221 = vunpack.c.l.b16 %v93
    %v222 = vunpack.c.l.b16 %v94
    %v223 = vunpack.c.l.b16 %v95
    %v224 = vunpack.c.l.b16 %v96
    %v225 = vunpack.c.l.b16 %v97
    %v226 = vunpack.c.l.b16 %v98
    %v227 = vunpack.c.l.b16 %v99
    %v228 = vunpack.c.l.b16 %v100
    %v229 = vunpack.c.l.b16 %v101
    %v230 = vunpack.c.l.b16 %v102
    %v231 = vunpack.c.l.b16 %v103
    %v232 = vunpack.c.l.b16 %v104
    %v233 = vunpack.c.l.b16 %v105
    %v234 = vunpack.c.l.b16 %v106
    %v235 = vunpack.c.l.b16 %v107
    %v236 = vpack.c.b16 %v173, %v172
    %v237 = vpack.c.b16 %v175, %v174
    %v238 = vpack.c.b16 %v177, %v176
    %v239 = vpack.c.b16 %v179, %v178
    %v240 = vpack.c.b16 %v181, %v180
    %v241 = vpack.c.b16 %v183, %v182
    %v242 = vpack.c.b16 %v185, %v184
    %v243 = vpack.c.b16 %v187, %v186
    %v244 = vpack.c.b16 %v189, %v188
    %v245 = vpack.c.b16 %v191, %v190
    %v246 = vpack.c.b16 %v193, %v192
    %v247 = vpack.c.b16 %v195, %v194
    %v248 = vpack.c.b16 %v197, %v196
    %v249 = vpack.c.b16 %v199, %v198
    %v250 = vpack.c.b16 %v201, %v200
    %v251 = vpack.c.b16 %v203, %v202
    %v252 = vpack.c.b16 %v205, %v204
    %v253 = vpack.c.b16 %v207, %v206
    %v254 = vpack.c.b16 %v209, %v208
    %v255 = vpack.c.b16 %v211, %v210
    %v256 = vpack.c.b16 %v213, %v212
    %v257 = vpack.c.b16 %v215, %v214
    %v258 = vpack.c.b16 %v217, %v216
    %v259 = vpack.c.b16 %v219, %v218
    %v260 = vpack.c.b16 %v221, %v220
    %v261 = vpack.c.b16 %v223, %v222
    %v262 = vpack.c.b16 %v225, %v224
    %v263 = vpack.c.b16 %v227, %v226
    %v264 = vpack.c.b16 %v229, %v228
    %v265 = vpack.c.b16 %v231, %v230
    %v266 = vpack.c.b16 %v233, %v232
    %v267 = vpack.c.b16 %v235, %v234
    %300 = vmatprep.subr.bf16.mxu0 0
    %301 = vmatpush1.bf16.msra.mxu0 %v236
    %302 = vmatprep.subr.bf16.mxu0 0
    %303 = vmatpush1.bf16.msra.mxu0 %v237
    %304 = vmatprep.subr.bf16.mxu0 0
    %305 = vmatpush1.bf16.msra.mxu0 %v238
    %306 = vmatprep.subr.bf16.mxu0 0
    %307 = vmatpush1.bf16.msra.mxu0 %v239
    %308 = vmatprep.subr.bf16.mxu0 0
    %309 = vmatpush1.bf16.msra.mxu0 %v240
    %310 = vmatprep.subr.bf16.mxu0 0
    %311 = vmatpush1.bf16.msra.mxu0 %v241
    %312 = vmatprep.subr.bf16.mxu0 0
    %313 = vmatpush1.bf16.msra.mxu0 %v242
    %314 = vmatprep.subr.bf16.mxu0 0
    %315 = vmatpush1.bf16.msra.mxu0 %v243
    %316 = vmatprep.subr.bf16.mxu0 0
    %317 = vmatpush1.bf16.msra.mxu0 %v244
    %318 = vmatprep.subr.bf16.mxu0 0
    %319 = vmatpush1.bf16.msra.mxu0 %v245
    %320 = vmatprep.subr.bf16.mxu0 0
    %321 = vmatpush1.bf16.msra.mxu0 %v246
    %322 = vmatprep.subr.bf16.mxu0 0
    %323 = vmatpush1.bf16.msra.mxu0 %v247
    %324 = vmatprep.subr.bf16.mxu0 0
    %325 = vmatpush1.bf16.msra.mxu0 %v248
    %326 = vmatprep.subr.bf16.mxu0 0
    %327 = vmatpush1.bf16.msra.mxu0 %v249
    %328 = vmatprep.subr.bf16.mxu0 0
    %329 = vmatpush1.bf16.msra.mxu0 %v250
    %330 = vmatprep.subr.bf16.mxu0 0
    %331 = vmatpush1.bf16.msra.mxu0 %v251
    %332 = vmatprep.mubr.bf16.mxu0 %v41
    %333 = vmatmul.mubr.bf16.gmra.mrb[0].mxu0 %v40
    %v334 = vpop.f32.mrb[0].mxu0
    %v335 = vadd.f32 0.0, %v334
    %v336 = vpop.f32.mrb[0].mxu0
    %v337 = vpop.f32.mrb[0].mxu0
    %v338 = vadd.f32 0.0, %v337
    %v339 = vpop.f32.mrb[0].mxu0
    %340 = vdwg.mxu0
    %341 = vmatprep.subr.bf16.mxu0 0
    %342 = vmatpush1.bf16.msra.mxu0 %v252
    %343 = vmatprep.subr.bf16.mxu0 0
    %344 = vmatpush1.bf16.msra.mxu0 %v253
    %345 = vmatprep.subr.bf16.mxu0 0
    %346 = vmatpush1.bf16.msra.mxu0 %v254
    %347 = vmatprep.subr.bf16.mxu0 0
    %348 = vmatpush1.bf16.msra.mxu0 %v255
    %349 = vmatprep.subr.bf16.mxu0 0
    %350 = vmatpush1.bf16.msra.mxu0 %v256
    %351 = vmatprep.subr.bf16.mxu0 0
    %352 = vmatpush1.bf16.msra.mxu0 %v257
    %353 = vmatprep.subr.bf16.mxu0 0
    %354 = vmatpush1.bf16.msra.mxu0 %v258
    %355 = vmatprep.subr.bf16.mxu0 0
    %356 = vmatpush1.bf16.msra.mxu0 %v259
    %357 = vmatprep.subr.bf16.mxu0 0
    %358 = vmatpush1.bf16.msra.mxu0 %v260
    %359 = vmatprep.subr.bf16.mxu0 0
    %360 = vmatpush1.bf16.msra.mxu0 %v261
    %361 = vmatprep.subr.bf16.mxu0 0
    %362 = vmatpush1.bf16.msra.mxu0 %v262
    %363 = vmatprep.subr.bf16.mxu0 0
    %364 = vmatpush1.bf16.msra.mxu0 %v263
    %365 = vmatprep.subr.bf16.mxu0 0
    %366 = vmatpush1.bf16.msra.mxu0 %v264
    %367 = vmatprep.subr.bf16.mxu0 0
    %368 = vmatpush1.bf16.msra.mxu0 %v265
    %369 = vmatprep.subr.bf16.mxu0 0
    %370 = vmatpush1.bf16.msra.mxu0 %v266
    %371 = vmatprep.subr.bf16.mxu0 0
    %372 = vmatpush1.bf16.msra.mxu0 %v267
    %373 = vmatprep.mubr.bf16.mxu0 %v43
    %374 = vmatmul.mubr.bf16.gmra.mrb[0].mxu0 %v42
    %v375 = vpop.f32.mrb[0].mxu0
    %v376 = vadd.f32 %v335, %v375
    %v377 = vpop.f32.mrb[0].mxu0
    %v378 = vpop.f32.mrb[0].mxu0
    %v379 = vadd.f32 %v338, %v378
    %v380 = vpop.f32.mrb[0].mxu0
    %381 = vdwg.mxu0
    %v382 = vadd.f32 %v30, %v376
    %v383 = vadd.f32 %v31, %v379
    %vm384 = vcmask 130048
    %385 = vst.msk [vmem:[#allocation2] sm:$0xff] %vm384, %v382
    %386 = vst.msk [vmem:[#allocation2 + $0x8] sm:$0xff] %vm384, %v383
    // Predicated region
    $region18: #{tpu_custom_call.1} parent=1 // pred_check
      _
    $region19: #{tpu_custom_call.1} parent=1 // pred_check_branch
      %388 = sbr.rel (0) target = $region21
    $region20: #{tpu_custom_call.1} parent=1 // pred_region
      %s390 = ssub.s32 256, 256
      %391 = vsyncadd [#allocation3], %s390
      %s392 = sshll.u32 [#allocation2], 4
      %s393 = int_to_ptr.vmem [resolvable:$true] %s392
      %398 = dma.vmem_to_hbm [thread:$0]  %s393, 256, %s3, [#allocation3], 128, 128, 8
    $region21: #{tpu_custom_call.1} parent=1 // pred_fallthru
      _
    // Predicated region
    $region22: #{tpu_custom_call.1} parent=1 // pred_check
      _
    $region23: #{tpu_custom_call.1} parent=1 // pred_check_branch
      %400 = sbr.rel (0) target = $region25
    $region24: #{tpu_custom_call.1} parent=1 // pred_region
      %401 = dma.done [#allocation3], 256
    $region25: #{tpu_custom_call.1} parent=1 // pred_fallthru
      _
    %402 = vsyncpa [#allocation3], 1

</llo_original>
